<compile_context>
chip_gen: v6e
topology: v6e:2x2x1
jax: 0.10.0
libtpu: 0.0.40
codegen_flags: <defaults>
</compile_context>

<pallas_src>
import functools

import jax
import jax.numpy as jnp
from jax.experimental import pallas as pl
from jax.experimental.pallas import tpu as pltpu


def _round_up(x, m):
    return (x + m - 1) // m * m


def _gdice_stats_kernel(logits_ref, labels_ref, cnt_ref, inter_ref, psum_ref,
                        *, hw, ignore_value):
    n = pl.program_id(0)
    t = pl.program_id(1)

    # Resident accumulators: zero once on the very first grid step.
    @pl.when(jnp.logical_and(n == 0, t == 0))
    def _():
        cnt_ref[...] = jnp.zeros_like(cnt_ref)
        inter_ref[...] = jnp.zeros_like(inter_ref)
        psum_ref[...] = jnp.zeros_like(psum_ref)

    logits = logits_ref[0].astype(jnp.float32)   # (C, T)  classes on sublanes
    labels = labels_ref[0]                       # (1, T)  lane-dense int32
    C, T = logits.shape

    # Mask for the (possibly out-of-range) tail block + ignore_index pixels.
    lane = jax.lax.broadcasted_iota(jnp.int32, (1, T), 1)
    in_range = (t * T + lane) < hw                               # (1, T)
    valid = jnp.logical_and(in_range, labels != ignore_value)    # (1, T)
    valid_f = valid.astype(jnp.float32)

    # Neutralize garbage logits in out-of-range lanes before the softmax.
    logits = jnp.where(in_range, logits, 0.0)

    # Numerically-stable softmax over the class (sublane) axis.
    m = jnp.max(logits, axis=0, keepdims=True)                   # (1, T)
    e = jnp.exp(logits - m)                                      # (C, T)
    p = e / jnp.sum(e, axis=0, keepdims=True)                    # (C, T)

    # One-hot encoding via iota/compare (built once per tile).
    class_ids = jax.lax.broadcasted_iota(jnp.int32, (C, T), 0)
    onehot = jnp.where(jnp.logical_and(class_ids == labels, valid), 1.0, 0.0)

    cnt_ref[...] += onehot            # per-class pixel counts
    inter_ref[...] += p * onehot      # per-class intersection (p at true class)
    psum_ref[...] += p * valid_f      # per-class softmax sum over valid pixels


def gdice_loss(output, target, weights=None, ignore_index=None, *,
               tile_pix=8192):
    """Generalized Dice loss matching GDiceLoss.forward."""
    N, C, H, W = output.shape
    HW = H * W

    # Free views of the NCHW input -- no transpose, no pad.
    logits = output.reshape(N, C, HW)
    labels = target.reshape(N, 1, HW).astype(jnp.int32)

    # Lane-dense pixel tiles: multiple of 128, capped to (rounded-up) HW.
    T = min(_round_up(tile_pix, 128), _round_up(HW, 128))
    num_tiles = pl.cdiv(HW, T)

    ignore_value = -1 if ignore_index is None else int(ignore_index)

    kernel = functools.partial(_gdice_stats_kernel, hw=HW,
                               ignore_value=ignore_value)

    cnt_t, inter_t, psum_t = pl.pallas_call(
        kernel,
        out_shape=(jax.ShapeDtypeStruct((C, T), jnp.float32),
                   jax.ShapeDtypeStruct((C, T), jnp.float32),
                   jax.ShapeDtypeStruct((C, T), jnp.float32)),
        grid_spec=pltpu.PrefetchScalarGridSpec(
            num_scalar_prefetch=0,
            grid=(N, num_tiles),
            in_specs=[pl.BlockSpec((1, C, T), lambda n, t: (n, 0, t)),
                      pl.BlockSpec((1, 1, T), lambda n, t: (n, 0, t))],
            out_specs=[pl.BlockSpec((C, T), lambda n, t: (0, 0)),
                       pl.BlockSpec((C, T), lambda n, t: (0, 0)),
                       pl.BlockSpec((C, T), lambda n, t: (0, 0))]),
        compiler_params=pltpu.CompilerParams(
            dimension_semantics=("arbitrary", "arbitrary"),
            vmem_limit_bytes=32 * 1024 * 1024),
    )(logits, labels)

    # Scalar epilogue (negligible work).
    eps = 0.0001
    cnt = jnp.sum(cnt_t, axis=1)       # (C,)  sum of one-hot target per class
    inter = jnp.sum(inter_t, axis=1)   # (C,)  sum of p * onehot per class
    psum = jnp.sum(psum_t, axis=1)     # (C,)  sum of p over valid pixels

    w = 1.0 / (cnt * cnt + eps)
    numerator = w * inter
    denominator = w * (psum + cnt) + eps
    if weights is None:
        weights = 1.0
    loss_per_channel = weights * (1.0 - 2.0 * numerator / denominator)
    return jnp.sum(loss_per_channel) / C


def _reference_gdice(output, target, weights=None, ignore_index=None):
    """Pure-JAX mirror of the PyTorch GDiceLoss.forward for validation."""
    N, C, H, W = output.shape
    p = jax.nn.softmax(output.astype(jnp.float32), axis=1)
    eps = 0.0001
    t = target.astype(jnp.int32)
    if ignore_index is not None:
        mask = t == ignore_index
        t = jnp.where(mask, 0, t)
        onehot = jax.nn.one_hot(t, C, axis=1, dtype=jnp.float32)
        onehot = jnp.where(mask[:, None, :, :], 0.0, onehot)
    else:
        onehot = jax.nn.one_hot(t, C, axis=1, dtype=jnp.float32)
    w = 1.0 / (jnp.sum(onehot, axis=(0, 2, 3)) ** 2 + eps)
    inter = jnp.sum(p * onehot, axis=(0, 2, 3))
    denom = p + onehot
    if ignore_index is not None:
        denom = jnp.where(mask[:, None, :, :], 0.0, denom)
    denom = w * jnp.sum(denom, axis=(0, 2, 3)) + eps
    numer = w * inter
    if weights is None:
        weights = 1.0
    loss_per_channel = weights * (1.0 - 2.0 * numer / denom)
    return jnp.sum(loss_per_channel) / C


if __name__ == "__main__":
    key = jax.random.PRNGKey(0)
    k1, k2, k3 = jax.random.split(key, 3)

    N, C, H, W = 2, 4, 16, 16
    preds = jax.random.normal(k1, (N, C, H, W), dtype=jnp.float32)
    labels = jax.random.randint(k2, (N, H, W), 0, C, dtype=jnp.int32)

    # Default forward path (ignore_index=None, weights=None).
    out = jax.block_until_ready(gdice_loss(preds, labels))
    ref = _reference_gdice(preds, labels)
    assert jnp.allclose(out, ref, rtol=1e-5, atol=1e-6), (out, ref)

    # Exercise the ignore_index path too.
    IGN = 255
    ignore_mask = jax.random.bernoulli(k3, 0.1, (N, H, W))
    labels_ign = jnp.where(ignore_mask, IGN, labels)
    out2 = jax.block_until_ready(gdice_loss(preds, labels_ign, ignore_index=IGN))
    ref2 = _reference_gdice(preds, labels_ign, ignore_index=IGN)
    assert jnp.allclose(out2, ref2, rtol=1e-5, atol=1e-6), (out2, ref2)

    print("KERNEL_OK")
</pallas_src>

<mosaic_0001>
module attributes {stable_mosaic.version = 11 : i64} {
  func.func @_gdice_stats_kernel(%arg0: i32, %arg1: i32, %arg2: memref<1x4x256xf32, #tpu.memory_space<vmem>>, %arg3: memref<1x1x256xi32, #tpu.memory_space<vmem>>, %arg4: memref<4x256xf32, #tpu.memory_space<vmem>>, %arg5: memref<4x256xf32, #tpu.memory_space<vmem>>, %arg6: memref<4x256xf32, #tpu.memory_space<vmem>>) attributes {dimension_semantics = [#tpu.dimension_semantics<arbitrary>, #tpu.dimension_semantics<arbitrary>], iteration_bounds = array<i64: 2, 1>, scalar_prefetch = 0 : i64, scratch_operands = 0 : i64, tpu.core_type = #tpu.core_type<tc>, window_params = [{transform_indices = @transform_0, window_bounds = array<i64: 1, 4, 256>}, {transform_indices = @transform_1, window_bounds = array<i64: 1, 1, 256>}, {pipeline_mode = #tpu.pipeline_mode<synchronous>, transform_indices = @transform_2, window_bounds = array<i64: 4, 256>}, {pipeline_mode = #tpu.pipeline_mode<synchronous>, transform_indices = @transform_3, window_bounds = array<i64: 4, 256>}, {pipeline_mode = #tpu.pipeline_mode<synchronous>, transform_indices = @transform_4, window_bounds = array<i64: 4, 256>}]} {
    %c0_i32 = arith.constant 0 : i32
    %0 = arith.cmpi eq, %arg0, %c0_i32 : i32
    %c0_i32_0 = arith.constant 0 : i32
    %1 = arith.cmpi eq, %arg1, %c0_i32_0 : i32
    %2 = arith.andi %0, %1 : i1
    %3 = arith.extui %2 : i1 to i32
    %c0_i32_1 = arith.constant 0 : i32
    %4 = arith.cmpi ne, %3, %c0_i32_1 : i32
    scf.if %4 {
      %cst_24 = arith.constant 0.000000e+00 : f32
      %53 = vector.broadcast %cst_24 : f32 to vector<4x256xf32>
      %c0_25 = arith.constant 0 : index
      %c0_26 = arith.constant 0 : index
      %54 = vector.load %arg4[%c0_25, %c0_26] : memref<4x256xf32, #tpu.memory_space<vmem>>, vector<4x256xf32>
      tpu.vector_store %arg4[%c0_25, %c0_26], %53 {strides = array<i32>} : memref<4x256xf32, #tpu.memory_space<vmem>>, vector<4x256xf32>,
      %cst_27 = arith.constant 0.000000e+00 : f32
      %55 = vector.broadcast %cst_27 : f32 to vector<4x256xf32>
      %c0_28 = arith.constant 0 : index
      %c0_29 = arith.constant 0 : index
      %56 = vector.load %arg5[%c0_28, %c0_29] : memref<4x256xf32, #tpu.memory_space<vmem>>, vector<4x256xf32>
      tpu.vector_store %arg5[%c0_28, %c0_29], %55 {strides = array<i32>} : memref<4x256xf32, #tpu.memory_space<vmem>>, vector<4x256xf32>,
      %cst_30 = arith.constant 0.000000e+00 : f32
      %57 = vector.broadcast %cst_30 : f32 to vector<4x256xf32>
      %c0_31 = arith.constant 0 : index
      %c0_32 = arith.constant 0 : index
      %58 = vector.load %arg6[%c0_31, %c0_32] : memref<4x256xf32, #tpu.memory_space<vmem>>, vector<4x256xf32>
      tpu.vector_store %arg6[%c0_31, %c0_32], %57 {strides = array<i32>} : memref<4x256xf32, #tpu.memory_space<vmem>>, vector<4x256xf32>,
    } else {
    }
    %c0 = arith.constant 0 : index
    %c0_2 = arith.constant 0 : index
    %c0_3 = arith.constant 0 : index
    %5 = vector.load %arg2[%c0, %c0_2, %c0_3] : memref<1x4x256xf32, #tpu.memory_space<vmem>>, vector<1x4x256xf32>
    %6 = vector.shape_cast %5 : vector<1x4x256xf32> to vector<4x256xf32>
    %c0_4 = arith.constant 0 : index
    %c0_5 = arith.constant 0 : index
    %c0_6 = arith.constant 0 : index
    %7 = vector.load %arg3[%c0_4, %c0_5, %c0_6] : memref<1x1x256xi32, #tpu.memory_space<vmem>>, vector<1x1x256xi32>
    %8 = vector.shape_cast %7 : vector<1x1x256xi32> to vector<1x256xi32>
    %9 = tpu.iota {dimensions = array<i32: 1>} : vector<1x256xi32>
    %c256_i32 = arith.constant 256 : i32
    %10 = arith.muli %arg1, %c256_i32 : i32
    %11 = vector.broadcast %10 : i32 to vector<1x256xi32>
    %12 = arith.addi %11, %9 : vector<1x256xi32>
    %c256_i32_7 = arith.constant 256 : i32
    %13 = vector.broadcast %c256_i32_7 : i32 to vector<1x256xi32>
    %14 = arith.cmpi slt, %12, %13 : vector<1x256xi32>
    %c-1_i32 = arith.constant -1 : i32
    %15 = vector.broadcast %c-1_i32 : i32 to vector<1x256xi32>
    %16 = arith.cmpi ne, %8, %15 : vector<1x256xi32>
    %17 = arith.andi %14, %16 : vector<1x256xi1>
    %18 = arith.extui %17 : vector<1x256xi1> to vector<1x256xi32>
    %19 = arith.sitofp %18 : vector<1x256xi32> to vector<1x256xf32>
    %cst = arith.constant 0.000000e+00 : f32
    %20 = vector.shape_cast %14 : vector<1x256xi1> to vector<1x256xi1>
    %21 = vector.broadcast %20 : vector<1x256xi1> to vector<4x256xi1>
    %22 = vector.broadcast %cst : f32 to vector<4x256xf32>
    %23 = arith.select %21, %6, %22 : vector<4x256xi1>, vector<4x256xf32>
    %cst_8 = arith.constant dense<0xFF800000> : vector<256xf32>
    %24 = vector.multi_reduction <maximumf>, %23, %cst_8 [0] : vector<4x256xf32> to vector<256xf32>
    %25 = vector.shape_cast %24 : vector<256xf32> to vector<1x256xf32>
    %26 = vector.broadcast %25 : vector<1x256xf32> to vector<4x256xf32>
    %27 = arith.subf %23, %26 : vector<4x256xf32>
    %28 = math.exp %27 : vector<4x256xf32>
    %cst_9 = arith.constant dense<0.000000e+00> : vector<256xf32>
    %29 = vector.multi_reduction <add>, %28, %cst_9 [0] : vector<4x256xf32> to vector<256xf32>
    %30 = vector.shape_cast %29 : vector<256xf32> to vector<1x256xf32>
    %31 = vector.broadcast %30 : vector<1x256xf32> to vector<4x256xf32>
    %32 = arith.divf %28, %31 : vector<4x256xf32>
    %33 = tpu.iota {dimensions = array<i32: 0>} : vector<4x256xi32>
    %34 = vector.broadcast %8 : vector<1x256xi32> to vector<4x256xi32>
    %35 = arith.cmpi eq, %33, %34 : vector<4x256xi32>
    %36 = vector.broadcast %17 : vector<1x256xi1> to vector<4x256xi1>
    %37 = arith.andi %35, %36 : vector<4x256xi1>
    %cst_10 = arith.constant 1.000000e+00 : f32
    %cst_11 = arith.constant 0.000000e+00 : f32
    %38 = vector.broadcast %cst_10 : f32 to vector<4x256xf32>
    %39 = vector.broadcast %cst_11 : f32 to vector<4x256xf32>
    %40 = arith.select %37, %38, %39 : vector<4x256xi1>, vector<4x256xf32>
    %c0_12 = arith.constant 0 : index
    %c0_13 = arith.constant 0 : index
    %41 = vector.load %arg4[%c0_12, %c0_13] : memref<4x256xf32, #tpu.memory_space<vmem>>, vector<4x256xf32>
    %42 = arith.addf %41, %40 : vector<4x256xf32>
    %c0_14 = arith.constant 0 : index
    %c0_15 = arith.constant 0 : index
    %43 = vector.load %arg4[%c0_14, %c0_15] : memref<4x256xf32, #tpu.memory_space<vmem>>, vector<4x256xf32>
    tpu.vector_store %arg4[%c0_14, %c0_15], %42 {strides = array<i32>} : memref<4x256xf32, #tpu.memory_space<vmem>>, vector<4x256xf32>,
    %c0_16 = arith.constant 0 : index
    %c0_17 = arith.constant 0 : index
    %44 = vector.load %arg5[%c0_16, %c0_17] : memref<4x256xf32, #tpu.memory_space<vmem>>, vector<4x256xf32>
    %45 = arith.mulf %32, %40 : vector<4x256xf32>
    %46 = arith.addf %44, %45 : vector<4x256xf32>
    %c0_18 = arith.constant 0 : index
    %c0_19 = arith.constant 0 : index
    %47 = vector.load %arg5[%c0_18, %c0_19] : memref<4x256xf32, #tpu.memory_space<vmem>>, vector<4x256xf32>
    tpu.vector_store %arg5[%c0_18, %c0_19], %46 {strides = array<i32>} : memref<4x256xf32, #tpu.memory_space<vmem>>, vector<4x256xf32>,
    %c0_20 = arith.constant 0 : index
    %c0_21 = arith.constant 0 : index
    %48 = vector.load %arg6[%c0_20, %c0_21] : memref<4x256xf32, #tpu.memory_space<vmem>>, vector<4x256xf32>
    %49 = vector.broadcast %19 : vector<1x256xf32> to vector<4x256xf32>
    %50 = arith.mulf %32, %49 : vector<4x256xf32>
    %51 = arith.addf %48, %50 : vector<4x256xf32>
    %c0_22 = arith.constant 0 : index
    %c0_23 = arith.constant 0 : index
    %52 = vector.load %arg6[%c0_22, %c0_23] : memref<4x256xf32, #tpu.memory_space<vmem>>, vector<4x256xf32>
    tpu.vector_store %arg6[%c0_22, %c0_23], %51 {strides = array<i32>} : memref<4x256xf32, #tpu.memory_space<vmem>>, vector<4x256xf32>,
    return
  }
  func.func @transform_0(%arg0: i32, %arg1: i32) -> (i32, i32, i32) {
    %c0_i32 = arith.constant 0 : i32
    %c0_i32_0 = arith.constant 0 : i32
    return %arg0, %c0_i32, %arg1 : i32, i32, i32
  }
  func.func @transform_1(%arg0: i32, %arg1: i32) -> (i32, i32, i32) {
    %c0_i32 = arith.constant 0 : i32
    %c0_i32_0 = arith.constant 0 : i32
    return %arg0, %c0_i32, %arg1 : i32, i32, i32
  }
  func.func @transform_2(%arg0: i32, %arg1: i32) -> (i32, i32) {
    %c0_i32 = arith.constant 0 : i32
    %c0_i32_0 = arith.constant 0 : i32
    %c0_i32_1 = arith.constant 0 : i32
    return %c0_i32, %c0_i32_0 : i32, i32
  }
  func.func @transform_3(%arg0: i32, %arg1: i32) -> (i32, i32) {
    %c0_i32 = arith.constant 0 : i32
    %c0_i32_0 = arith.constant 0 : i32
    %c0_i32_1 = arith.constant 0 : i32
    return %c0_i32, %c0_i32_0 : i32, i32
  }
  func.func @transform_4(%arg0: i32, %arg1: i32) -> (i32, i32) {
    %c0_i32 = arith.constant 0 : i32
    %c0_i32_0 = arith.constant 0 : i32
    %c0_i32_1 = arith.constant 0 : i32
    return %c0_i32, %c0_i32_0 : i32, i32
  }
}

</mosaic_0001>

<llo_original>
// kernel: tpu_custom_call.1
$region0: #{tpu_custom_call.1}
  #allocation0 [shape = 'u32[]', space=smem, size = 0x4, offset = 0x4, fixed_abs, tag = 'smem constant byte address 0x4 - core index']
  #allocation1 [shape = 'u32[144,128]{1,0:T(1,128)}', space=vmem, size = 0x12000, scoped, tag = 'internal scratch']
  %s0 = inlined_call_operand.hbm [shape: f32[2,4,256], index: 0, kind: input, shape index: {}]
  %s1 = inlined_call_operand.hbm [shape: s32[2,1,256], index: 1, kind: input, shape index: {}]
  %s2 = inlined_call_operand.hbm [shape: f32[4,256], index: 2, kind: output, shape index: {0}]
  %s3 = inlined_call_operand.hbm [shape: f32[4,256], index: 3, kind: output, shape index: {1}]
  %s4 = inlined_call_operand.hbm [shape: f32[4,256], index: 4, kind: output, shape index: {2}]
  %5 = xla_tuple %s2, %s3, %s4
  %s6 = sld [smem:[#allocation0]]
  $region69: #{tpu_custom_call.1} parent=0
    _
  %s8 = ssub.s32 1, %s6
  %s9 = scalar_select 0, %s8, %s6
  $region1: #{tpu_custom_call.1} parent=0
    #allocation2 [shape = 'u8[8192]{0}', space=vmem, size = 0x2000, scoped, tag = 'input window, operand 0']
    #allocation3 [shape = 's32[2]{0}', space=sflag, size = 0x8, scoped, tag = 'scoped memory for tpu_custom_call.1']
    #allocation4 [shape = 's32[2]{0}', space=sflag, size = 0x8, scoped, tag = 'scoped memory for tpu_custom_call.1']
    #allocation5 [shape = 'u8[2048]{0}', space=vmem, size = 0x800, scoped, tag = 'input window, operand 1']
    #allocation6 [shape = 's32[2]{0}', space=sflag, size = 0x8, scoped, tag = 'scoped memory for tpu_custom_call.1']
    #allocation7 [shape = 'u8[4096]{0}', space=vmem, size = 0x1000, scoped, tag = 'output window, operand 0, single buffered']
    #allocation8 [shape = 'u8[4096]{0}', space=vmem, size = 0x1000, scoped, tag = 'output window, operand 1, single buffered']
    #allocation9 [shape = 's32[1]{0}', space=sflag, size = 0x4, scoped, tag = 'scoped memory for tpu_custom_call.1']
    #allocation10 [shape = 'u8[4096]{0}', space=vmem, size = 0x1000, scoped, tag = 'output window, operand 2, single buffered']
    %10 = vsyncpa [#allocation3], 0
    %s11 = scalar_lea.sflag [#allocation3], 1
    %12 = vsyncpa %s11, 0
    %13 = vsyncpa [#allocation6], 0
    %s14 = scalar_lea.sflag [#allocation6], 1
    %15 = vsyncpa %s14, 0
    %16 = vsyncpa [#allocation4], 0
    %17 = vsyncpa [#allocation9], 0
    loop: start=0, step=1, limit=4
    $region2: #{tpu_custom_call.1} parent=1 // loop_pre_header
      _
    $region3: #{tpu_custom_call.1} parent=1 // loop_header
      %s19 = sphi 0, %s23
      %p20 = scmp.ge.s32.totalorder %s19, 4
      %s26 = sphi 0, %s38
      %s27 = sphi 0, %s34
      %s28 = sphi 0, %s26
      %s29 = sphi 0, %s27
      %s30 = sphi 0, %s28
      %s31 = sphi 0, %s29
      %s43 = sphi 0, %s45
      %s46 = sphi 0, %s43
      %s47 = sphi 0, %s46
      %s63 = sphi 0, %s47
      %s71 = sphi 0, %s73
      %s74 = sphi 0, %s71
      %s75 = sphi 0, %s74
      %s91 = sphi 0, %s75
      %s95 = sphi 0, %s95
      %s97 = sphi 0, %s95
      %s98 = sphi 0, %s97
      %s112 = sphi 0, %s98
      %s116 = sphi 0, %s116
      %s118 = sphi 0, %s116
      %s119 = sphi 0, %s118
      %s133 = sphi 0, %s119
      %s137 = sphi 0, %s137
      %s139 = sphi 0, %s137
      %s140 = sphi 0, %s139
      %s154 = sphi 0, %s140
    $region4: #{tpu_custom_call.1} parent=1 // loop_header_branch
      %22 = sbr.rel (%p20) target = $region8
    $region5: #{tpu_custom_call.1} parent=1 // loop_body
      %s24 = ssub.s32 %s19, 1
      %s25 = ssub.s32 %s19, 2
      %s32 = sadd.s32 1, %s27
      %p33 = scmp.ge.s32.totalorder %s32, 1
      %s34 = scalar_select %p33, 0, %s32
      %s35 = sadd.s32 1, %s26
      %s36 = scalar_select %p33, %s35, %s26
      %p37 = scmp.ge.s32.totalorder %s36, 2
      %s38 = scalar_select %p37, 0, %s36
      %s39 = ssub.s32 %s26, %s38
      %s40 = ssub.s32 %s27, %s34
      %s41 = sor.u32 %s39, %s40
      %p42 = scmp.eq.s32.totalorder %s41, 0
      %s44 = sadd.s32 %s43, 1
      %s45 = scalar_select %p42, %s43, %s44
      %p48 = pneg %p42
      %p49 = scmp.eq.s32.totalorder %s19, 1
      %p50 = por %p48, %p49
      %p51 = scmp.ne.s32.totalorder %s43, %s46
      %p52 = scmp.eq.s32.totalorder %s19, 0
      %p53 = por %p51, %p52
      %p54 = scmp.ne.s32.totalorder %s43, %s46
      %p55 = scmp.eq.s32.totalorder %s24, 1
      %p56 = por %p54, %p55
      %p57 = scmp.ne.s32.totalorder %s46, %s47
      %p58 = scmp.eq.s32.totalorder %s24, 0
      %p59 = por %p57, %p58
      %p60 = scmp.ne.s32.totalorder %s46, %s47
      %p61 = scmp.eq.s32.totalorder %s25, 1
      %p62 = por %p60, %p61
      %p64 = scmp.ne.s32.totalorder %s47, %s63
      %p65 = scmp.eq.s32.totalorder %s25, 0
      %p66 = por %p64, %p65
      %s67 = ssub.s32 %s26, %s38
      %s68 = ssub.s32 %s27, %s34
      %s69 = sor.u32 %s67, %s68
      %p70 = scmp.eq.s32.totalorder %s69, 0
      %s72 = sadd.s32 %s71, 1
      %s73 = scalar_select %p70, %s71, %s72
      %p76 = pneg %p70
      %p77 = scmp.eq.s32.totalorder %s19, 1
      %p78 = por %p76, %p77
      %p79 = scmp.ne.s32.totalorder %s71, %s74
      %p80 = scmp.eq.s32.totalorder %s19, 0
      %p81 = por %p79, %p80
      %p82 = scmp.ne.s32.totalorder %s71, %s74
      %p83 = scmp.eq.s32.totalorder %s24, 1
      %p84 = por %p82, %p83
      %p85 = scmp.ne.s32.totalorder %s74, %s75
      %p86 = scmp.eq.s32.totalorder %s24, 0
      %p87 = por %p85, %p86
      %p88 = scmp.ne.s32.totalorder %s74, %s75
      %p89 = scmp.eq.s32.totalorder %s25, 1
      %p90 = por %p88, %p89
      %p92 = scmp.ne.s32.totalorder %s75, %s91
      %p93 = scmp.eq.s32.totalorder %s25, 0
      %p94 = por %p92, %p93
      %s96 = sadd.s32 %s95, 1
      %p99 = scmp.eq.s32.totalorder %s19, 1
      %p100 = scmp.ne.s32.totalorder %s95, %s97
      %p101 = scmp.eq.s32.totalorder %s19, 0
      %p102 = por %p100, %p101
      %p103 = scmp.ne.s32.totalorder %s95, %s97
      %p104 = scmp.eq.s32.totalorder %s24, 1
      %p105 = por %p103, %p104
      %p106 = scmp.ne.s32.totalorder %s97, %s98
      %p107 = scmp.eq.s32.totalorder %s24, 0
      %p108 = por %p106, %p107
      %p109 = scmp.ne.s32.totalorder %s97, %s98
      %p110 = scmp.eq.s32.totalorder %s25, 1
      %p111 = por %p109, %p110
      %p113 = scmp.ne.s32.totalorder %s98, %s112
      %p114 = scmp.eq.s32.totalorder %s25, 0
      %p115 = por %p113, %p114
      %s117 = sadd.s32 %s116, 1
      %p120 = scmp.eq.s32.totalorder %s19, 1
      %p121 = scmp.ne.s32.totalorder %s116, %s118
      %p122 = scmp.eq.s32.totalorder %s19, 0
      %p123 = por %p121, %p122
      %p124 = scmp.ne.s32.totalorder %s116, %s118
      %p125 = scmp.eq.s32.totalorder %s24, 1
      %p126 = por %p124, %p125
      %p127 = scmp.ne.s32.totalorder %s118, %s119
      %p128 = scmp.eq.s32.totalorder %s24, 0
      %p129 = por %p127, %p128
      %p130 = scmp.ne.s32.totalorder %s118, %s119
      %p131 = scmp.eq.s32.totalorder %s25, 1
      %p132 = por %p130, %p131
      %p134 = scmp.ne.s32.totalorder %s119, %s133
      %p135 = scmp.eq.s32.totalorder %s25, 0
      %p136 = por %p134, %p135
      %s138 = sadd.s32 %s137, 1
      %p141 = scmp.eq.s32.totalorder %s19, 1
      %p142 = scmp.ne.s32.totalorder %s137, %s139
      %p143 = scmp.eq.s32.totalorder %s19, 0
      %p144 = por %p142, %p143
      %p145 = scmp.ne.s32.totalorder %s137, %s139
      %p146 = scmp.eq.s32.totalorder %s24, 1
      %p147 = por %p145, %p146
      %p148 = scmp.ne.s32.totalorder %s139, %s140
      %p149 = scmp.eq.s32.totalorder %s24, 0
      %p150 = por %p148, %p149
      %p151 = scmp.ne.s32.totalorder %s139, %s140
      %p152 = scmp.eq.s32.totalorder %s25, 1
      %p153 = por %p151, %p152
      %p155 = scmp.ne.s32.totalorder %s140, %s154
      %p156 = scmp.eq.s32.totalorder %s25, 0
      %p157 = por %p155, %p156
      %p158 = scmp.le.s32.totalorder 1, %s19
      %p159 = scmp.lt.s32.totalorder %s19, 3
      %p160 = pnand %p158, %p159
      %p161 = pneg %p160
      // Predicated region
      $region9: #{tpu_custom_call.1} parent=5 // pred_check
        _
      $region10: #{tpu_custom_call.1} parent=5 // pred_check_branch
        %163 = sbr.rel (%p160) target = $region12
      $region11: #{tpu_custom_call.1} parent=5 // pred_region
        %s164 = ssub.s32 %s19, 1
      $region12: #{tpu_custom_call.1} parent=5 // pred_fallthru
        _
      %p165 = scmp.lt.s32.totalorder %s19, 2
      // Predicated region
      $region13: #{tpu_custom_call.1} parent=5 // pred_check
        %p166 = pneg %p165
      $region14: #{tpu_custom_call.1} parent=5 // pred_check_branch
        %168 = sbr.rel (%p166) target = $region16
      $region15: #{tpu_custom_call.1} parent=5 // pred_region
        // Predicated region
        $region17: #{tpu_custom_call.1} parent=15 // pred_check
          %p169 = pneg %p53
        $region18: #{tpu_custom_call.1} parent=15 // pred_check_branch
          %171 = sbr.rel (%p169) target = $region20
        $region19: #{tpu_custom_call.1} parent=15 // pred_region
          %s172 = sand.u32 %s43, 1
          %s173 = scalar_lea.sflag [#allocation3], %s172
          %s174 = sand.u32 %s43, 1
          %s175 = smul.addr %s174, 8
          %s176 = scalar_lea.vmem [#allocation2], %s175
          %s177 = smul.u32 2, %s27
          %s179 = ssub.s32 128, 128
          %180 = vsyncadd %s173, %s179
          %s181 = smul.addr %s26, 2
          %s182 = sadd.s32 %s177, %s181
          %s183 = smul.addr %s182, 64
          %s184 = scalar_lea.hbm %s0, %s183
          %s186 = sshll.u32 %s176, 4
          %s187 = int_to_ptr.vmem [resolvable:$true] %s186
          %189 = dma.hbm_to_vmem [thread:$0]  %s184, 128, %s187, %s173
        $region20: #{tpu_custom_call.1} parent=15 // pred_fallthru
          _
        // Predicated region
        $region21: #{tpu_custom_call.1} parent=15 // pred_check
          %p190 = pneg %p81
        $region22: #{tpu_custom_call.1} parent=15 // pred_check_branch
          %192 = sbr.rel (%p190) target = $region24
        $region23: #{tpu_custom_call.1} parent=15 // pred_region
          %s193 = sand.u32 %s71, 1
          %s194 = scalar_lea.sflag [#allocation6], %s193
          %s195 = sand.u32 %s71, 1
          %s196 = smul.addr %s195, 2
          %s197 = scalar_lea.vmem [#allocation5], %s196
          %s198 = smul.u32 2, %s27
          %s200 = ssub.s32 32, 32
          %201 = vsyncadd %s194, %s200
          %s202 = smul.addr %s26, 2
          %s203 = sadd.s32 %s198, %s202
          %s204 = smul.addr %s203, 16
          %s205 = scalar_lea.hbm %s1, %s204
          %s207 = sshll.u32 %s197, 4
          %s208 = int_to_ptr.vmem [resolvable:$true] %s207
          %210 = dma.hbm_to_vmem [thread:$0]  %s205, 32, %s208, %s194
        $region24: #{tpu_custom_call.1} parent=15 // pred_fallthru
          _
      $region16: #{tpu_custom_call.1} parent=5 // pred_fallthru
        _
      %p211 = scmp.le.s32.totalorder 1, %s19
      %p212 = scmp.lt.s32.totalorder %s19, 3
      %p213 = pnand %p211, %p212
      %p214 = pneg %p213
      // Predicated region
      $region25: #{tpu_custom_call.1} parent=5 // pred_check
        _
      $region26: #{tpu_custom_call.1} parent=5 // pred_check_branch
        %216 = sbr.rel (%p213) target = $region28
      $region27: #{tpu_custom_call.1} parent=5 // pred_region
        %s217 = ssub.s32 %s19, 1
        %s218 = sand.u32 %s46, 1
        %s219 = scalar_lea.sflag [#allocation3], %s218
        %s220 = sand.u32 %s46, 1
        %s221 = smul.addr %s220, 8
        %s222 = scalar_lea.vmem [#allocation2], %s221
        // Predicated region
        $region29: #{tpu_custom_call.1} parent=27 // pred_check
          %p223 = pneg %p59
        $region30: #{tpu_custom_call.1} parent=27 // pred_check_branch
          %225 = sbr.rel (%p223) target = $region32
        $region31: #{tpu_custom_call.1} parent=27 // pred_region
          %226 = dma.done %s219, 128
        $region32: #{tpu_custom_call.1} parent=27 // pred_fallthru
          _
        %s227 = sand.u32 %s74, 1
        %s228 = scalar_lea.sflag [#allocation6], %s227
        %s229 = sand.u32 %s74, 1
        %s230 = smul.addr %s229, 2
        %s231 = scalar_lea.vmem [#allocation5], %s230
        // Predicated region
        $region33: #{tpu_custom_call.1} parent=27 // pred_check
          %p232 = pneg %p87
        $region34: #{tpu_custom_call.1} parent=27 // pred_check_branch
          %234 = sbr.rel (%p232) target = $region36
        $region35: #{tpu_custom_call.1} parent=27 // pred_region
          %235 = dma.done %s228, 32
        $region36: #{tpu_custom_call.1} parent=27 // pred_fallthru
          _
        %s236 = sand.u32 %s46, 1
        %s237 = scalar_lea.sflag [#allocation3], %s236
        %s238 = sand.u32 %s46, 1
        %s239 = smul.addr %s238, 8
        %s240 = scalar_lea.vmem [#allocation2], %s239
        %p241 = pneg %p59
        %p242 = pneg %p56
        %s243 = sand.u32 %s74, 1
        %s244 = scalar_lea.sflag [#allocation6], %s243
        %s245 = sand.u32 %s74, 1
        %s246 = smul.addr %s245, 2
        %s247 = scalar_lea.vmem [#allocation5], %s246
        %p248 = pneg %p87
        %p249 = pneg %p84
        %p250 = pneg %p108
        %p251 = pneg %p105
        %p252 = pneg %p129
        %p253 = pneg %p126
        %p254 = pneg %p150
        %p255 = pneg %p147
        %s256 = smul.u32 2, %s29
        %s257 = smul.u32 2, %s29
        %p258 = scmp.eq.s32.totalorder %s28, 0
        %p259 = scmp.eq.s32.totalorder %s29, 0
        %p260 = pnand %p258, %p259
        %p261 = pneg %p260
        // Predicated region
        $region37: #{tpu_custom_call.1} parent=27 // pred_check
          _
        $region38: #{tpu_custom_call.1} parent=27 // pred_check_branch
          %263 = sbr.rel (%p260) target = $region40
        $region39: #{tpu_custom_call.1} parent=27 // pred_region
          %264 = vst [vmem:[#allocation7] sm:$0xff] 0.0
          %265 = vst [vmem:[#allocation8] sm:$0xff] 0.0
          %266 = vst [vmem:[#allocation10] sm:$0xff] 0.0
        $region40: #{tpu_custom_call.1} parent=27 // pred_fallthru
          _
        %v267 = vld [vmem:[%s222] sm:$0xff]
        %v268 = vld [vmem:[%s231] sm:$0x3]
        %v269 = vlaneseq
        %v270 = vand.u32 %v269, 127
        %v271 = vadd.s32 %v270, 128
        %s272 = smul.u32 %s29, 256
        %v273 = vstv %s272
        %v274 = vadd.s32 %v273, %v270
        %v275 = vadd.s32 %v273, %v271
        %vm276 = vcmp.lt.s32.totalorder %v274, 256
        %vm277 = vcmp.lt.s32.totalorder %v275, 256
        %vm278 = vcmp.ne.s32.totalorder %v268, 4294967295
        %v279 = vsel %vm278, 1, 0
        %v280 = vlaneseq
        %v281 = vshrl.u32 %v280, 7
        %v282 = vsub.s32 0, %v281
        %v283 = vrot.slane %v279, %v282
        %v284 = vlaneseq
        %v285 = vshrl.u32 %v284, 7
        %v286 = vsub.s32 1, %v285
        %v287 = vrot.slane %v279, %v286
        %vm288 = vcmp.ne.s32.totalorder %v283, 0
        %vm289 = vcmp.ne.s32.totalorder %v287, 0
        %vm290 = vmand %vm276, %vm288
        %vm291 = vmand %vm277, %vm289
        %v292 = vsel %vm290, 1, 0
        %v293 = vsel %vm291, 1, 0
        %v294 = vcvt.s32.f32 %v292
        %v295 = vcvt.s32.f32 %v293
        %v296 = vsel %vm276, 1, 0
        %v297 = vsel %vm277, 1, 0
        %vm298 = vcmp.eq.s32.totalorder %v296, 1
        %vm299 = vcmp.eq.s32.totalorder %v297, 1
        %v301 = vcombine.high %v267, %v267
        %v303 = vsel %vm298, %v267, 0.0
        %v304 = vsel %vm299, %v301, 0.0
        %vm305 = vcmask 1043456
        %v306 = vsel %vm305, %v303, -inf
        %v307 = vrot.slane %v306, 4
        %v308 = vmax.f32 %v306, %v307
        %v309 = vrot.slane %v308, 2
        %v310 = vmax.f32 %v308, %v309
        %v311 = vrot.slane %v310, 1
        %v312 = vmax.f32 %v310, %v311
        %v313 = vsel %vm305, %v304, -inf
        %v314 = vrot.slane %v313, 4
        %v315 = vmax.f32 %v313, %v314
        %v316 = vrot.slane %v315, 2
        %v317 = vmax.f32 %v315, %v316
        %v318 = vrot.slane %v317, 1
        %v319 = vmax.f32 %v317, %v318
        %v320 = vsub.f32 %v303, %v312
        %v321 = vsub.f32 %v304, %v319
        %v322 = vmul.f32 %v320, 1.442695
        %v323 = vpow.pop %v322
        %v324 = vmul.f32 %v321, 1.442695
        %v325 = vpow.pop %v324
        %v326 = vsel %vm305, %v323, 0.0
        %v327 = vrot.slane %v326, 4
        %v328 = vadd.f32 %v326, %v327
        %v329 = vrot.slane %v328, 2
        %v330 = vadd.f32 %v328, %v329
        %v331 = vrot.slane %v330, 1
        %v332 = vadd.f32 %v330, %v331
        %v333 = vsel %vm305, %v325, 0.0
        %v334 = vrot.slane %v333, 4
        %v335 = vadd.f32 %v333, %v334
        %v336 = vrot.slane %v335, 2
        %v337 = vadd.f32 %v335, %v336
        %v338 = vrot.slane %v337, 1
        %v339 = vadd.f32 %v337, %v338
        %v340 = vrcp.pop %v332
        %v341 = vmul.f32 %v323, %v340
        %v342 = vrcp.pop %v339
        %v343 = vmul.f32 %v325, %v342
        %v344 = vlaneseq
        %v345 = vshrl.u32 %v344, 7
        %v346 = vlaneseq
        %v347 = vshrl.u32 %v346, 7
        %v348 = vsub.s32 0, %v347
        %v349 = vrot.slane %v268, %v348
        %v350 = vlaneseq
        %v351 = vshrl.u32 %v350, 7
        %v352 = vsub.s32 1, %v351
        %v353 = vrot.slane %v268, %v352
        %vm354 = vcmp.eq.s32.totalorder %v345, %v349
        %vm355 = vcmp.eq.s32.totalorder %v345, %v353
        %v356 = vlaneseq
        %v357 = vshrl.u32 %v356, 7
        %v358 = vsub.s32 0, %v357
        %v359 = vrot.slane %v292, %v358
        %v360 = vlaneseq
        %v361 = vshrl.u32 %v360, 7
        %v362 = vsub.s32 0, %v361
        %v363 = vrot.slane %v293, %v362
        %vm364 = vcmp.eq.s32.totalorder %v359, 1
        %vm365 = vcmp.eq.s32.totalorder %v363, 1
        %vm366 = vmand %vm354, %vm364
        %vm367 = vmand %vm355, %vm365
        %v368 = vsel %vm366, 1.0, 0.0
        %v369 = vsel %vm367, 1.0, 0.0
        %v370 = vld [vmem:[#allocation7] sm:$0xff]
        %v373 = vcombine.low %v368, %v369
        %v375 = vadd.f32 %v370, %v373
        %376 = vst [vmem:[#allocation7] sm:$0xff] %v375
        %v377 = vld [vmem:[#allocation8] sm:$0xff]
        %v378 = vmul.f32 %v341, %v368
        %v379 = vmul.f32 %v343, %v369
        %v382 = vcombine.low %v378, %v379
        %v384 = vadd.f32 %v377, %v382
        %385 = vst [vmem:[#allocation8] sm:$0xff] %v384
        %v386 = vld [vmem:[#allocation10] sm:$0xff]
        %v387 = vlaneseq
        %v388 = vshrl.u32 %v387, 7
        %v389 = vsub.s32 0, %v388
        %v390 = vrot.slane %v294, %v389
        %v391 = vlaneseq
        %v392 = vshrl.u32 %v391, 7
        %v393 = vsub.s32 0, %v392
        %v394 = vrot.slane %v295, %v393
        %v395 = vmul.f32 %v341, %v390
        %v396 = vmul.f32 %v343, %v394
        %v399 = vcombine.low %v395, %v396
        %v401 = vadd.f32 %v386, %v399
        %402 = vst [vmem:[#allocation10] sm:$0xff] %v401
        // Predicated region
        $region41: #{tpu_custom_call.1} parent=27 // pred_check
          %p403 = pneg %p105
        $region42: #{tpu_custom_call.1} parent=27 // pred_check_branch
          %405 = sbr.rel (%p403) target = $region44
        $region43: #{tpu_custom_call.1} parent=27 // pred_region
          %s407 = ssub.s32 128, 128
          %408 = vsyncadd [#allocation4], %s407
          %s410 = sshll.u32 [#allocation7], 4
          %s411 = int_to_ptr.vmem [resolvable:$true] %s410
          %413 = dma.vmem_to_hbm [thread:$0]  %s411, 128, %s2, [#allocation4]
        $region44: #{tpu_custom_call.1} parent=27 // pred_fallthru
          _
        // Predicated region
        $region45: #{tpu_custom_call.1} parent=27 // pred_check
          %p414 = pneg %p126
        $region46: #{tpu_custom_call.1} parent=27 // pred_check_branch
          %416 = sbr.rel (%p414) target = $region48
        $region47: #{tpu_custom_call.1} parent=27 // pred_region
          %s418 = ssub.s32 128, 128
          %419 = vsyncadd [#allocation9], %s418
          %s421 = sshll.u32 [#allocation8], 4
          %s422 = int_to_ptr.vmem [resolvable:$true] %s421
          %424 = dma.vmem_to_hbm [thread:$0]  %s422, 128, %s3, [#allocation9]
        $region48: #{tpu_custom_call.1} parent=27 // pred_fallthru
          _
        // Predicated region
        $region49: #{tpu_custom_call.1} parent=27 // pred_check
          %p425 = pneg %p147
        $region50: #{tpu_custom_call.1} parent=27 // pred_check_branch
          %427 = sbr.rel (%p425) target = $region52
        $region51: #{tpu_custom_call.1} parent=27 // pred_region
          %s429 = ssub.s32 128, 128
          %430 = vsyncadd [#allocation9], %s429
          %s432 = sshll.u32 [#allocation10], 4
          %s433 = int_to_ptr.vmem [resolvable:$true] %s432
          %435 = dma.vmem_to_hbm [thread:$0]  %s433, 128, %s4, [#allocation9]
        $region52: #{tpu_custom_call.1} parent=27 // pred_fallthru
          _
        // Predicated region
        $region53: #{tpu_custom_call.1} parent=27 // pred_check
          %p436 = pneg %p105
        $region54: #{tpu_custom_call.1} parent=27 // pred_check_branch
          %438 = sbr.rel (%p436) target = $region56
        $region55: #{tpu_custom_call.1} parent=27 // pred_region
          %439 = dma.done [#allocation4], 128
        $region56: #{tpu_custom_call.1} parent=27 // pred_fallthru
          _
        // Predicated region
        $region57: #{tpu_custom_call.1} parent=27 // pred_check
          %p440 = pneg %p126
        $region58: #{tpu_custom_call.1} parent=27 // pred_check_branch
          %442 = sbr.rel (%p440) target = $region60
        $region59: #{tpu_custom_call.1} parent=27 // pred_region
          %443 = dma.done [#allocation9], 128
        $region60: #{tpu_custom_call.1} parent=27 // pred_fallthru
          _
        // Predicated region
        $region61: #{tpu_custom_call.1} parent=27 // pred_check
          %p444 = pneg %p147
        $region62: #{tpu_custom_call.1} parent=27 // pred_check_branch
          %446 = sbr.rel (%p444) target = $region64
        $region63: #{tpu_custom_call.1} parent=27 // pred_region
          %447 = dma.done [#allocation9], 128
        $region64: #{tpu_custom_call.1} parent=27 // pred_fallthru
          _
      $region28: #{tpu_custom_call.1} parent=5 // pred_fallthru
        _
      %p448 = scmp.le.s32.totalorder 2, %s19
      // Predicated region
      $region65: #{tpu_custom_call.1} parent=5 // pred_check
        %p449 = pneg %p448
      $region66: #{tpu_custom_call.1} parent=5 // pred_check_branch
        %451 = sbr.rel (%p449) target = $region68
      $region67: #{tpu_custom_call.1} parent=5 // pred_region
        %s452 = ssub.s32 %s19, 2
      $region68: #{tpu_custom_call.1} parent=5 // pred_fallthru
        _
    $region6: #{tpu_custom_call.1} parent=1 // loop_footer
      %s23 = sadd.s32 1, %s19
    $region7: #{tpu_custom_call.1} parent=1 // loop_footer_branch
      %18 = sbr.rel target = $region3
    $region8: #{tpu_custom_call.1} parent=1 // loop_exit
      _
    %453 = vsyncpa [#allocation3], 1
    %s454 = scalar_lea.sflag [#allocation3], 1
    %455 = vsyncpa %s454, 1
    %456 = vsyncpa [#allocation6], 1
    %s457 = scalar_lea.sflag [#allocation6], 1
    %458 = vsyncpa %s457, 1
    %459 = vsyncpa [#allocation4], 1
    %s460 = scalar_lea.sflag [#allocation4], 1
    %461 = vsyncpa %s460, 1
    %462 = vsyncpa [#allocation9], 1

</llo_original>
